<compile_context>
chip_gen: v6e
topology: v6e:2x2x1
jax: 0.10.0
libtpu: 0.0.40
codegen_flags: <defaults>
</compile_context>

<pallas_src>
import jax
import jax.numpy as jnp
from jax.experimental import pallas as pl
from jax.experimental.pallas import tpu as pltpu

EPS = 1e-6


# ---------------------------------------------------------------------------
# Kernels
# ---------------------------------------------------------------------------

def _audio_norm_kernel(x_ref, o_ref):
    """Fast path: one (block_rows, N) tile holds whole rows."""
    x = x_ref[...].astype(jnp.float32)                      # (bm, N)
    n = x.shape[-1]
    mean = jnp.sum(x, axis=-1, keepdims=True) * (1.0 / n)
    centered = x - mean                                     # reused for output
    # Two-pass (centered) variance on the resident tile: avoids the
    # catastrophic cancellation of E[x^2]-E[x]^2 for DC-offset audio.
    # Unbiased (ddof=1) like torch.std; n == 1 gives inf/NaN, same as torch.
    var = jnp.sum(centered * centered, axis=-1, keepdims=True) * (1.0 / (n - 1))
    std = jnp.sqrt(jnp.maximum(var, 0.0))
    # Per-row reciprocal + multiply instead of a full (bm, N) divide.
    # EPS added to std (not var), matching torch semantics exactly.
    inv = pl.reciprocal(std + EPS, approx=False)            # (bm, 1)
    o_ref[...] = (centered * inv).astype(o_ref.dtype)


def _stats_kernel(x_ref, s1_ref, s2_ref):
    """Long-clip path, pass 1: per-row sum / sum-of-squares accumulation.

    Grid is (row_blocks, n_chunks); the outputs keep the same block across the
    chunk axis, so they stay resident and act as accumulators (P3 pattern).
    Zero-padded columns contribute nothing to either sum.
    """
    j = pl.program_id(1)

    @pl.when(j == 0)
    def _():
        s1_ref[...] = jnp.zeros_like(s1_ref)
        s2_ref[...] = jnp.zeros_like(s2_ref)

    x = x_ref[...].astype(jnp.float32)                      # (bm, chunk)
    s1_ref[...] += jnp.sum(x, axis=-1, keepdims=True)
    s2_ref[...] += jnp.sum(x * x, axis=-1, keepdims=True)


def _chunked_norm_kernel(x_ref, mean_ref, inv_ref, o_ref):
    """Long-clip path, pass 2: apply per-row mean and 1/(std+eps)."""
    x = x_ref[...].astype(jnp.float32)
    o_ref[...] = ((x - mean_ref[...]) * inv_ref[...]).astype(o_ref.dtype)


# ---------------------------------------------------------------------------
# Tiling heuristics
# ---------------------------------------------------------------------------

def _round_up(x, m):
    return ((x + m - 1) // m) * m


def _sublane_multiple(dtype):
    """Dtype packing multiple for the sublane (row) axis."""
    itemsize = jnp.dtype(dtype).itemsize
    if itemsize >= 4:
        return 8
    if itemsize == 2:
        return 16
    return 32


def _chip_config():
    """Per-generation tile / VMEM budgets (conservative default = v7x)."""
    kind = ""
    try:
        kind = jax.devices()[0].device_kind.lower()
    except Exception:
        pass
    if "v6" in kind:
        return dict(name="v6e", ncores=1, target_tile=8 << 20,
                    max_tile=12 << 20, vmem_cap=96 << 20)
    if "v5" in kind and ("lite" in kind or "v5e" in kind):
        return dict(name="v5e", ncores=1, target_tile=8 << 20,
                    max_tile=12 << 20, vmem_cap=96 << 20)
    if "v5" in kind:  # v5p: 2 TensorCores, 128 MiB VMEM
        return dict(name="v5p", ncores=2, target_tile=8 << 20,
                    max_tile=12 << 20, vmem_cap=96 << 20)
    if "v4" in kind or "v3" in kind or "v2" in kind:
        return dict(name=kind or "old", ncores=2, target_tile=8 << 20,
                    max_tile=12 << 20, vmem_cap=96 << 20)
    # v7x and unknown: 64 MiB per-TC VMEM -> leave headroom for Mosaic scratch.
    return dict(name="v7x", ncores=2, target_tile=4 << 20,
                max_tile=6 << 20, vmem_cap=52 << 20)


def _choose_block_rows(B_pad, row_bytes, sub, cfg):
    """Rows per tile: a divisor of B_pad (no extra padded-row traffic), sized
    near the per-chip byte target; on multi-core chips prefer an even,
    pipeline-friendly step count."""
    cands = [r for r in range(sub, B_pad + 1, sub)
             if B_pad % r == 0 and r * row_bytes <= cfg["max_tile"]]
    if not cands:
        return sub

    def closeness(r):
        return abs(r * row_bytes - cfg["target_tile"])

    if cfg["ncores"] <= 1:
        # v5e / v6e: single TensorCore -- just size DMAs toward the target.
        return min(cands, key=closeness)

    # Megacore: prefer even step counts with >=8 steps (>=4 per core), but
    # never trade down to sub-MiB tiles for it.
    min_tile = min(1 << 20, max(r * row_bytes for r in cands))
    big = [r for r in cands if r * row_bytes >= min_tile]

    def tier(r):
        steps = B_pad // r
        if steps >= 8 and steps % 2 == 0:
            return 0
        if steps >= 4 and steps % 2 == 0:
            return 1
        if steps >= 2 and steps % 2 == 0:
            return 2
        if steps > 1:
            return 3          # odd > 1: one core gets ~1 extra step
        return 4              # single step: only one core does work

    return min(big, key=lambda r: (tier(r), closeness(r)))


# ---------------------------------------------------------------------------
# Wrappers
# ---------------------------------------------------------------------------

def _audio_normalizer_chunked(x, *, block_rows, chunk_n, vmem_cap=52 << 20):
    """2-D (row-block x N-chunk) path for rows too long to fit in VMEM."""
    B, N = x.shape
    B_pad = _round_up(B, block_rows)
    N_pad = _round_up(N, chunk_n)
    x_p = x
    if (B_pad, N_pad) != (B, N):
        x_p = jnp.pad(x, ((0, B_pad - B), (0, N_pad - N)))

    row_grid = B_pad // block_rows
    col_grid = N_pad // chunk_n
    tile_f32 = block_rows * chunk_n * 4
    vmem_limit = int(min(vmem_cap, max(32 << 20, 8 * tile_f32 + (4 << 20))))

    # Pass 1: per-row sum and sum of squares, accumulated across chunks.
    s1, s2 = pl.pallas_call(
        _stats_kernel,
        out_shape=(jax.ShapeDtypeStruct((B_pad, 1), jnp.float32),
                   jax.ShapeDtypeStruct((B_pad, 1), jnp.float32)),
        grid_spec=pltpu.PrefetchScalarGridSpec(
            num_scalar_prefetch=0,
            grid=(row_grid, col_grid),
            in_specs=[pl.BlockSpec((block_rows, chunk_n), lambda i, j: (i, j))],
            out_specs=[pl.BlockSpec((block_rows, 1), lambda i, j: (i, 0)),
                       pl.BlockSpec((block_rows, 1), lambda i, j: (i, 0))],
        ),
        compiler_params=pltpu.CompilerParams(
            dimension_semantics=("parallel", "arbitrary"),
            vmem_limit_bytes=vmem_limit,
        ),
    )(x_p)

    # Tiny per-row math on (B_pad, 1) arrays in plain JAX (true N, not N_pad).
    # TODO(synk): the single-pass variance here can lose precision for
    # strongly DC-offset ultra-long clips; a centered second pass would fix it
    # at the cost of one extra read of x.
    n = jnp.float32(N)
    mean = s1 / n
    var = (s2 - n * mean * mean) / jnp.maximum(n - 1.0, 1.0)
    inv = 1.0 / (jnp.sqrt(jnp.maximum(var, 0.0)) + EPS)

    out = pl.pallas_call(
        _chunked_norm_kernel,
        out_shape=jax.ShapeDtypeStruct((B_pad, N_pad), x.dtype),
        grid_spec=pltpu.PrefetchScalarGridSpec(
            num_scalar_prefetch=0,
            grid=(row_grid, col_grid),
            in_specs=[pl.BlockSpec((block_rows, chunk_n), lambda i, j: (i, j)),
                      pl.BlockSpec((block_rows, 1), lambda i, j: (i, 0)),
                      pl.BlockSpec((block_rows, 1), lambda i, j: (i, 0))],
            out_specs=pl.BlockSpec((block_rows, chunk_n), lambda i, j: (i, j)),
        ),
        compiler_params=pltpu.CompilerParams(
            dimension_semantics=("parallel", "parallel"),
            vmem_limit_bytes=vmem_limit,
        ),
    )(x_p, mean, inv)
    if (B_pad, N_pad) != (B, N):
        out = out[:B, :N]
    return out


def audio_normalizer(x: jax.Array, *, block_rows=None) -> jax.Array:
    """(x - mean) / (std + eps) per row; std unbiased (ddof=1), eps = 1e-6."""
    B, N = x.shape
    cfg = _chip_config()
    sub = _sublane_multiple(x.dtype)
    row_bytes = N * 4                      # f32 compute width inside the kernel

    # Long clips: whole rows don't fit a reasonable VMEM tile even at the
    # minimum row count -> 2-D chunked-reduction path.
    if block_rows is None and sub * row_bytes > cfg["max_tile"]:
        chunk_n = max(128, (cfg["target_tile"] // (sub * 4)) // 128 * 128)
        chunk_n = min(chunk_n, _round_up(N, 128))
        return _audio_normalizer_chunked(x, block_rows=sub, chunk_n=chunk_n,
                                         vmem_cap=cfg["vmem_cap"])

    if block_rows is not None:
        block_rows = max(sub, (block_rows // sub) * sub)
        B_pad = _round_up(B, block_rows)
    else:
        # Pad only to the dtype sublane multiple; block_rows is then a divisor
        # of B_pad, so padded-row HBM traffic is at most (sub - 1) rows.
        B_pad = _round_up(B, sub)
        block_rows = _choose_block_rows(B_pad, row_bytes, sub, cfg)

    # Zero-padded rows normalize to zero (0 * 1/eps), so no NaNs leak in.
    x_p = x if B_pad == B else jnp.pad(x, ((0, B_pad - B), (0, 0)))

    itemsize = jnp.dtype(x.dtype).itemsize
    tile_io = block_rows * N * itemsize
    tile_f32 = block_rows * N * 4
    # 2x double-buffered input + 2x output tiles (I/O dtype) + ~2 f32
    # temporaries + headroom, clamped to a per-generation budget that leaves
    # room for Mosaic's internal scratch.
    vmem_limit = int(min(cfg["vmem_cap"],
                         max(32 << 20, 4 * tile_io + 2 * tile_f32 + (4 << 20))))

    out = pl.pallas_call(
        _audio_norm_kernel,
        out_shape=jax.ShapeDtypeStruct((B_pad, N), x.dtype),
        grid_spec=pltpu.PrefetchScalarGridSpec(
            num_scalar_prefetch=0,
            grid=(B_pad // block_rows,),
            in_specs=[pl.BlockSpec((block_rows, N), lambda i: (i, 0))],
            out_specs=pl.BlockSpec((block_rows, N), lambda i: (i, 0)),
        ),
        compiler_params=pltpu.CompilerParams(
            dimension_semantics=("parallel",),
            vmem_limit_bytes=vmem_limit,
        ),
    )(x_p)
    return out[:B] if B_pad != B else out


def audio_normalizer_ref(x: jax.Array) -> jax.Array:
    x32 = x.astype(jnp.float32)
    mean = jnp.mean(x32, axis=1, keepdims=True)
    std = jnp.std(x32, axis=1, keepdims=True, ddof=1)   # unbiased, like torch
    return ((x32 - mean) / (std + EPS)).astype(x.dtype)


if __name__ == "__main__":
    key = jax.random.PRNGKey(0)

    # Small shapes consistent with the module: a batch of short audio clips.
    B, N = 8, 256
    x = jax.random.normal(key, (B, N), dtype=jnp.float32) * 3.0 + 1.5

    out = audio_normalizer(x)
    jax.block_until_ready(out)
    ref = audio_normalizer_ref(x)
    assert out.shape == x.shape and out.dtype == x.dtype
    assert jnp.allclose(out, ref, atol=1e-4, rtol=1e-4), "fast path mismatch"

    # Non-divisible batch: pads only to the sublane multiple (50 -> 56 rows).
    x2 = jax.random.normal(jax.random.PRNGKey(1), (50, N), dtype=jnp.float32) * 2.0 - 0.7
    out2 = audio_normalizer(x2)
    jax.block_until_ready(out2)
    assert out2.shape == x2.shape
    assert jnp.allclose(out2, audio_normalizer_ref(x2), atol=1e-4, rtol=1e-4), \
        "padded-batch mismatch"

    # bf16 audio exercises the dtype-aware (16-row) sublane rounding.
    x3 = (jax.random.normal(jax.random.PRNGKey(2), (32, N), dtype=jnp.float32)
          * 1.7 + 0.2).astype(jnp.bfloat16)
    out3 = audio_normalizer(x3)
    jax.block_until_ready(out3)
    assert out3.shape == x3.shape and out3.dtype == x3.dtype
    assert jnp.allclose(out3.astype(jnp.float32),
                        audio_normalizer_ref(x3).astype(jnp.float32),
                        atol=5e-2, rtol=5e-2), "bf16 mismatch"

    # Exercise the long-clip chunked path explicitly at small, forced sizes
    # (also covers ragged N -> zero-padded columns).
    x4 = jax.random.normal(jax.random.PRNGKey(3), (10, 300), dtype=jnp.float32) * 1.3 + 0.4
    out4 = _audio_normalizer_chunked(x4, block_rows=8, chunk_n=128)
    jax.block_until_ready(out4)
    assert out4.shape == x4.shape
    assert jnp.allclose(out4, audio_normalizer_ref(x4), atol=1e-4, rtol=1e-4), \
        "chunked path mismatch"

    print("KERNEL_OK")
</pallas_src>

<mosaic_0001>
module attributes {stable_mosaic.version = 11 : i64} {
  func.func @_audio_norm_kernel(%arg0: i32, %arg1: memref<8x256xf32, #tpu.memory_space<vmem>>, %arg2: memref<8x256xf32, #tpu.memory_space<vmem>>) attributes {dimension_semantics = [#tpu.dimension_semantics<parallel>], iteration_bounds = array<i64: 1>, scalar_prefetch = 0 : i64, scratch_operands = 0 : i64, tpu.core_type = #tpu.core_type<tc>, window_params = [{transform_indices = @transform_0, window_bounds = array<i64: 8, 256>}, {transform_indices = @transform_1, window_bounds = array<i64: 8, 256>}]} {
    %c0 = arith.constant 0 : index
    %c0_0 = arith.constant 0 : index
    %0 = vector.load %arg1[%c0, %c0_0] : memref<8x256xf32, #tpu.memory_space<vmem>>, vector<8x256xf32>
    %cst = arith.constant dense<0.000000e+00> : vector<8xf32>
    %1 = vector.multi_reduction <add>, %0, %cst [1] : vector<8x256xf32> to vector<8xf32>
    %2 = vector.shape_cast %1 : vector<8xf32> to vector<8x1xf32>
    %cst_1 = arith.constant 3.906250e-03 : f32
    %3 = vector.broadcast %cst_1 : f32 to vector<8x1xf32>
    %4 = arith.mulf %2, %3 : vector<8x1xf32>
    %5 = vector.broadcast %4 : vector<8x1xf32> to vector<8x256xf32>
    %6 = arith.subf %0, %5 : vector<8x256xf32>
    %7 = arith.mulf %6, %6 : vector<8x256xf32>
    %cst_2 = arith.constant dense<0.000000e+00> : vector<8xf32>
    %8 = vector.multi_reduction <add>, %7, %cst_2 [1] : vector<8x256xf32> to vector<8xf32>
    %9 = vector.shape_cast %8 : vector<8xf32> to vector<8x1xf32>
    %cst_3 = arith.constant 0.00392156886 : f32
    %10 = vector.broadcast %cst_3 : f32 to vector<8x1xf32>
    %11 = arith.mulf %9, %10 : vector<8x1xf32>
    %cst_4 = arith.constant 0.000000e+00 : f32
    %12 = vector.broadcast %cst_4 : f32 to vector<8x1xf32>
    %13 = arith.maximumf %11, %12 : vector<8x1xf32>
    %14 = math.sqrt %13 : vector<8x1xf32>
    %cst_5 = arith.constant 9.99999997E-7 : f32
    %15 = vector.broadcast %cst_5 : f32 to vector<8x1xf32>
    %16 = arith.addf %14, %15 : vector<8x1xf32>
    %17 = tpu.reciprocal %16 : vector<8x1xf32> -> vector<8x1xf32>
    %18 = vector.broadcast %17 : vector<8x1xf32> to vector<8x256xf32>
    %19 = arith.mulf %6, %18 : vector<8x256xf32>
    %c0_6 = arith.constant 0 : index
    %c0_7 = arith.constant 0 : index
    %20 = vector.load %arg2[%c0_6, %c0_7] : memref<8x256xf32, #tpu.memory_space<vmem>>, vector<8x256xf32>
    tpu.vector_store %arg2[%c0_6, %c0_7], %19 {strides = array<i32>} : memref<8x256xf32, #tpu.memory_space<vmem>>, vector<8x256xf32>,
    return
  }
  func.func @transform_0(%arg0: i32) -> (i32, i32) {
    %c0_i32 = arith.constant 0 : i32
    %c0_i32_0 = arith.constant 0 : i32
    return %arg0, %c0_i32 : i32, i32
  }
  func.func @transform_1(%arg0: i32) -> (i32, i32) {
    %c0_i32 = arith.constant 0 : i32
    %c0_i32_0 = arith.constant 0 : i32
    return %arg0, %c0_i32 : i32, i32
  }
}

</mosaic_0001>

<llo_original>
// kernel: tpu_custom_call.1
$region0: #{tpu_custom_call.1}
  #allocation0 [shape = 'u32[]', space=smem, size = 0x4, offset = 0x4, fixed_abs, tag = 'smem constant byte address 0x4 - core index']
  #allocation1 [shape = 'u32[144,128]{1,0:T(1,128)}', space=vmem, size = 0x12000, scoped, tag = 'internal scratch']
  %s0 = inlined_call_operand.hbm [shape: f32[8,256], index: 0, kind: input, shape index: {}]
  %s1 = inlined_call_operand.hbm [shape: f32[8,256], index: 1, kind: output, shape index: {}]
  %s2 = sld [smem:[#allocation0]]
  $region18: #{tpu_custom_call.1} parent=0
    _
  %s4 = ssub.s32 1, %s2
  %s5 = scalar_select 0, %s4, %s2
  $region1: #{tpu_custom_call.1} parent=0
    #allocation2 [shape = 'u8[8192]{0}', space=vmem, size = 0x2000, scoped, tag = 'input window, operand 0, single buffered']
    #allocation3 [shape = 's32[1]{0}', space=sflag, size = 0x4, scoped, tag = 'scoped memory for tpu_custom_call.1']
    #allocation4 [shape = 's32[1]{0}', space=sflag, size = 0x4, scoped, tag = 'scoped memory for tpu_custom_call.1']
    #allocation5 [shape = 'u8[8192]{0}', space=vmem, size = 0x2000, scoped, tag = 'output window, operand 0, single buffered']
    %6 = vsyncpa [#allocation3], 0
    %7 = vsyncpa [#allocation4], 0
    // Predicated region
    $region2: #{tpu_custom_call.1} parent=1 // pred_check
      _
    $region3: #{tpu_custom_call.1} parent=1 // pred_check_branch
      %9 = sbr.rel (0) target = $region5
    $region4: #{tpu_custom_call.1} parent=1 // pred_region
      %s11 = ssub.s32 256, 256
      %12 = vsyncadd [#allocation3], %s11
      %s14 = sshll.u32 [#allocation2], 4
      %s15 = int_to_ptr.vmem [resolvable:$true] %s14
      %17 = dma.hbm_to_vmem [thread:$0]  %s0, 256, %s15, [#allocation3]
    $region5: #{tpu_custom_call.1} parent=1 // pred_fallthru
      _
    // Predicated region
    $region6: #{tpu_custom_call.1} parent=1 // pred_check
      _
    $region7: #{tpu_custom_call.1} parent=1 // pred_check_branch
      %19 = sbr.rel (0) target = $region9
    $region8: #{tpu_custom_call.1} parent=1 // pred_region
      %20 = dma.done [#allocation3], 256
    $region9: #{tpu_custom_call.1} parent=1 // pred_fallthru
      _
    %v21 = vld [vmem:[#allocation2] sm:$0xff]
    %v22 = vld [vmem:[#allocation2 + $0x8] sm:$0xff]
    %v23 = vadd.f32 %v21, %v22
    %24 = vadd.xlane.f32.xlu0 %v23
    %v25 = vpop.xlane.xlu0 %24
    %v26 = vmul.f32 %v25, 0.00390625
    %v27 = vsub.f32 %v21, %v26
    %v28 = vsub.f32 %v22, %v26
    %v29 = vmul.f32 %v27, %v27
    %v30 = vmul.f32 %v28, %v28
    %v31 = vadd.f32 %v29, %v30
    %32 = vadd.xlane.f32.xlu0 %v31
    %v33 = vpop.xlane.xlu0 %32
    %v34 = vmul.f32 %v33, 0.003921569
    %v35 = vmax.f32 %v34, 0.0
    %v36 = vrsqrt.pop %v35
    %v37 = vmul.f32 %v35, %v36
    %vm38 = vcmp.eq.f32.partialorder %v35, inf
    %v39 = vsel %vm38, %v35, %v37
    %vm40 = vcmp.eq.f32.partialorder %v35, 0.0
    %v41 = vand.u32 %v35, 2147483648
    %v42 = vsel %vm40, %v41, %v39
    %v43 = vadd.f32 %v42, 1e-06
    %v44 = vrcp.pop %v43
    %v45 = vmul.f32 %v27, %v44
    %v46 = vmul.f32 %v28, %v44
    %47 = vst [vmem:[#allocation5] sm:$0xff] %v45
    %48 = vst [vmem:[#allocation5 + $0x8] sm:$0xff] %v46
    // Predicated region
    $region10: #{tpu_custom_call.1} parent=1 // pred_check
      _
    $region11: #{tpu_custom_call.1} parent=1 // pred_check_branch
      %50 = sbr.rel (0) target = $region13
    $region12: #{tpu_custom_call.1} parent=1 // pred_region
      %s52 = ssub.s32 256, 256
      %53 = vsyncadd [#allocation4], %s52
      %s55 = sshll.u32 [#allocation5], 4
      %s56 = int_to_ptr.vmem [resolvable:$true] %s55
      %58 = dma.vmem_to_hbm [thread:$0]  %s56, 256, %s1, [#allocation4]
    $region13: #{tpu_custom_call.1} parent=1 // pred_fallthru
      _
    // Predicated region
    $region14: #{tpu_custom_call.1} parent=1 // pred_check
      _
    $region15: #{tpu_custom_call.1} parent=1 // pred_check_branch
      %60 = sbr.rel (0) target = $region17
    $region16: #{tpu_custom_call.1} parent=1 // pred_region
      %61 = dma.done [#allocation4], 256
    $region17: #{tpu_custom_call.1} parent=1 // pred_fallthru
      _
    %62 = vsyncpa [#allocation3], 1
    %63 = vsyncpa [#allocation4], 1

</llo_original>
